<compile_context>
chip_gen: v6e
topology: v6e:2x2x1
jax: 0.10.0
libtpu: 0.0.40
codegen_flags: <defaults>
</compile_context>

<pallas_src>
import functools

import jax
import jax.numpy as jnp
import numpy as np
from jax.experimental import pallas as pl
from jax.experimental.pallas import tpu as pltpu

EMA_ALPHA = 0.9
LN_EPS = 1e-5
LANE = 128
NEG_BIG = -1e30   # pad-lane bias -> exp underflows to exactly 0 in the softmax


def _importance_kernel(mean_ref, state_ref, params_ref, out_w_ref, out_state_ref,
                       *, hidden_dim):
    H = hidden_dim
    M = mean_ref.shape[1]

    # ---- update_learning_curves: EMA on the (already batch-meaned) losses ---
    mean_losses = mean_ref[...]                        # [1, M]
    hist = state_ref[0:1, :]                           # [1, M] old loss_history
    impv = state_ref[1:2, :]                           # [1, M] old loss_improvement
    improvement = hist - mean_losses                   # uses OLD history (torch order)
    new_hist = EMA_ALPHA * hist + (1.0 - EMA_ALPHA) * mean_losses
    new_impv = EMA_ALPHA * impv + (1.0 - EMA_ALPHA) * improvement
    out_state_ref[0:1, :] = new_hist
    out_state_ref[1:2, :] = new_impv

    # ---- carve the packed parameter slab (static slices, zero-cost views) ---
    w1a   = params_ref[0:H, 0:M]                       # [H, M]  W1 cols for hist
    w1b   = params_ref[0:H, M:2 * M]                   # [H, M]  W1 cols for improvement
    b1    = params_ref[0:H, 2 * M:2 * M + 1]           # [H, 1]
    gamma = params_ref[0:H, 2 * M + 1:2 * M + 2]       # [H, 1]
    beta  = params_ref[0:H, 2 * M + 2:2 * M + 3]       # [H, 1]
    w2    = params_ref[H:2 * H, :]                     # [H, 128] (cols >= M are 0)
    b2    = params_ref[2 * H:2 * H + 1, :]             # [1, 128] (cols >= M are -1e30)
    lr    = params_ref[2 * H + 1:2 * H + 2, :]         # [1, 128] (cols >= M are 1.0)

    # ---- Linear(2M -> H): VPU multiply-accumulate + lane reduce (no MXU) ----
    prod = new_hist * w1a + new_impv * w1b             # [H, M]
    h = jnp.sum(prod, axis=1, keepdims=True) + b1      # [H, 1]

    # ---- LayerNorm over H (sublane axis), biased variance -------------------
    mu = jnp.mean(h, axis=0, keepdims=True)
    d = h - mu
    var = jnp.mean(d * d, axis=0, keepdims=True)
    h = d * jax.lax.rsqrt(var + LN_EPS)
    h = h * gamma + beta

    # ---- ReLU ----------------------------------------------------------------
    h = jnp.maximum(h, 0.0)                            # [H, 1]

    # ---- Linear(H -> M) on the 128-wide padded layout, scale by lr ----------
    raw = jnp.sum(h * w2, axis=0, keepdims=True) + b2  # [1, 128]; pad lanes = -1e30
    raw = raw * lr

    # ---- softmax over lanes; pad lanes contribute exactly 0 -----------------
    m = jnp.max(raw, axis=-1, keepdims=True)
    e = jnp.exp(raw - m)
    denom = jnp.sum(e, axis=-1, keepdims=True)
    out_w_ref[...] = e / denom                         # exact divide (review fix)


@functools.partial(jax.jit, static_argnames=("hidden_dim",))
def learning_curve_importance(modality_losses, state, params_slab, *, hidden_dim):
    """Functional forward pass.

    Args:
      modality_losses: [B, M] float32 per-sample modality losses.
      state:           [2, M] float32, row 0 = loss_history, row 1 = loss_improvement.
      params_slab:     packed parameter slab from pack_params / init_params.
      hidden_dim:      hidden size of the importance net (static).
    Returns:
      (importance_weights [B, M], new_state [2, M])
    """
    B, M = modality_losses.shape

    # O(B) reduce hoisted out of the kernel: fuses with the loss producer and
    # keeps the kernel's data-dependent input at a fixed (1, M).
    mean_losses = jnp.mean(modality_losses, axis=0, keepdims=True)

    vmem = pl.BlockSpec(memory_space=pltpu.MemorySpace.VMEM)
    slab_bytes = int(params_slab.size) * int(params_slab.dtype.itemsize)
    cost = pl.CostEstimate(
        flops=2 * hidden_dim * (2 * M) + 2 * hidden_dim * LANE + 16 * hidden_dim + 8 * LANE,
        transcendentals=LANE + hidden_dim,
        bytes_accessed=slab_bytes + 4 * (M + 4 * M + LANE),
    )

    w_row, new_state = pl.pallas_call(
        functools.partial(_importance_kernel, hidden_dim=hidden_dim),
        out_shape=(
            jax.ShapeDtypeStruct((1, LANE), jnp.float32),    # lane-dense weight row
            jax.ShapeDtypeStruct(state.shape, state.dtype),  # updated [hist; impv]
        ),
        in_specs=[vmem, vmem, vmem],
        out_specs=(vmem, vmem),
        input_output_aliases={1: 1},    # EMA state updated in place
        cost_estimate=cost,
    )(mean_losses, state, params_slab)

    # Batch broadcast of the batch-invariant row is left to XLA (fuses with
    # downstream consumers); only the first M lanes of w_row are meaningful.
    weights = jnp.broadcast_to(w_row[:, :M], (B, M))
    return weights, new_state


def pack_params(w1, b1, gamma, beta, w2, b2, lr, *, n_modalities, hidden_dim):
    """Pack importance_net / learning_rates into one lane-aligned f32 slab.

    Layout (rows x lanes), H = hidden_dim, M = n_modalities:
      [0:H,   0:M]    W1[:, :M]   (hist half)
      [0:H,   M:2M]   W1[:, M:]   (improvement half)
      [0:H,   2M]     b1
      [0:H,   2M+1]   LayerNorm gamma
      [0:H,   2M+2]   LayerNorm beta
      [H:2H,  0:M]    W2.T   (cols >= M stay 0)
      [2H,    0:M]    b2     (cols >= M = -1e30  -> softmax pad lanes == 0)
      [2H+1,  0:M]    learning_rates (cols >= M = 1.0)
    """
    M, H = n_modalities, hidden_dim
    rows = ((2 * H + 2 + 7) // 8) * 8
    slab = np.zeros((rows, LANE), np.float32)
    slab[0:H, 0:M] = np.asarray(w1[:, :M], np.float32)
    slab[0:H, M:2 * M] = np.asarray(w1[:, M:], np.float32)
    slab[0:H, 2 * M] = np.asarray(b1, np.float32)
    slab[0:H, 2 * M + 1] = np.asarray(gamma, np.float32)
    slab[0:H, 2 * M + 2] = np.asarray(beta, np.float32)
    slab[H:2 * H, 0:M] = np.asarray(w2, np.float32).T
    slab[2 * H, 0:M] = np.asarray(b2, np.float32)
    slab[2 * H, M:] = NEG_BIG
    slab[2 * H + 1, 0:M] = np.asarray(lr, np.float32)
    slab[2 * H + 1, M:] = 1.0
    return jnp.asarray(slab)


def init_params(key, n_modalities=4, hidden_dim=32):
    """nn.Linear-style init (uniform +/- 1/sqrt(fan_in)); returns (slab, raw dict)."""
    M, H = n_modalities, hidden_dim
    k1, k2, k3, k4 = jax.random.split(key, 4)
    bound1 = float((2.0 * M) ** -0.5)
    w1 = jax.random.uniform(k1, (H, 2 * M), jnp.float32, -bound1, bound1)
    b1 = jax.random.uniform(k2, (H,), jnp.float32, -bound1, bound1)
    bound2 = float(H ** -0.5)
    w2 = jax.random.uniform(k3, (M, H), jnp.float32, -bound2, bound2)
    b2 = jax.random.uniform(k4, (M,), jnp.float32, -bound2, bound2)
    gamma = jnp.ones((H,), jnp.float32)
    beta = jnp.zeros((H,), jnp.float32)
    lr = jnp.ones((M,), jnp.float32)
    raw = dict(w1=w1, b1=b1, gamma=gamma, beta=beta, w2=w2, b2=b2, lr=lr)
    slab = pack_params(w1, b1, gamma, beta, w2, b2, lr,
                       n_modalities=M, hidden_dim=H)
    return slab, raw


def _reference(modality_losses, hist, impv, p):
    """Pure-JAX mirror of the PyTorch forward (no jnp.dot, exact f32)."""
    mean_losses = jnp.mean(modality_losses, axis=0)                  # [M]
    improvement = hist - mean_losses
    new_hist = EMA_ALPHA * hist + (1.0 - EMA_ALPHA) * mean_losses
    new_impv = EMA_ALPHA * impv + (1.0 - EMA_ALPHA) * improvement
    feats = jnp.concatenate([new_hist, new_impv])                    # [2M]
    h = jnp.sum(p["w1"] * feats[None, :], axis=1) + p["b1"]          # [H]
    mu = jnp.mean(h)
    var = jnp.mean((h - mu) ** 2)
    h = (h - mu) * jax.lax.rsqrt(var + LN_EPS) * p["gamma"] + p["beta"]
    h = jnp.maximum(h, 0.0)
    raw = jnp.sum(p["w2"] * h[None, :], axis=1) + p["b2"]            # [M]
    raw = raw * p["lr"]
    w = jax.nn.softmax(raw)
    B = modality_losses.shape[0]
    return jnp.broadcast_to(w[None, :], (B, raw.shape[0])), new_hist, new_impv


if __name__ == "__main__":
    key = jax.random.PRNGKey(0)
    batch, n_modalities, hidden_dim = 2, 4, 32

    k_param, k_loss = jax.random.split(key)
    params_slab, raw_params = init_params(k_param, n_modalities=n_modalities,
                                          hidden_dim=hidden_dim)

    # Registered buffers packed into one (2, M) state array:
    #   row 0 = loss_history (init ones), row 1 = loss_improvement (init zeros).
    state = jnp.concatenate(
        [jnp.ones((1, n_modalities), jnp.float32),
         jnp.zeros((1, n_modalities), jnp.float32)], axis=0)

    modality_losses = jax.random.uniform(k_loss, (batch, n_modalities), jnp.float32)

    # TODO(synk): the modality_losses=None branch of the reference forward (skip
    # the EMA update, batch_size=1) is a caller-side decision not handled here.
    weights, new_state = learning_curve_importance(
        modality_losses, state, params_slab, hidden_dim=hidden_dim)
    jax.block_until_ready((weights, new_state))

    assert weights.shape == (batch, n_modalities)
    assert bool(jnp.allclose(jnp.sum(weights, axis=1), 1.0, atol=1e-5))

    ref_w, ref_hist, ref_impv = _reference(modality_losses, state[0], state[1], raw_params)
    assert bool(jnp.allclose(weights, ref_w, rtol=1e-3, atol=1e-4))
    assert bool(jnp.allclose(new_state[0], ref_hist, rtol=1e-5, atol=1e-6))
    assert bool(jnp.allclose(new_state[1], ref_impv, rtol=1e-5, atol=1e-6))
    print("KERNEL_OK")
</pallas_src>

<mosaic_0001>
module attributes {stable_mosaic.version = 11 : i64} {
  func.func @_importance_kernel(%arg0: memref<1x4xf32, #tpu.memory_space<vmem>>, %arg1: memref<2x4xf32, #tpu.memory_space<vmem>>, %arg2: memref<72x128xf32, #tpu.memory_space<vmem>>, %arg3: memref<1x128xf32, #tpu.memory_space<vmem>>, %arg4: memref<2x4xf32, #tpu.memory_space<vmem>>) attributes {dimension_semantics = [], scalar_prefetch = 0 : i64, scratch_operands = 0 : i64, tpu.core_type = #tpu.core_type<tc>} {
    %c0 = arith.constant 0 : index
    %c0_0 = arith.constant 0 : index
    %0 = vector.load %arg0[%c0, %c0_0] : memref<1x4xf32, #tpu.memory_space<vmem>>, vector<1x4xf32>
    %c0_1 = arith.constant 0 : index
    %c0_2 = arith.constant 0 : index
    %1 = vector.load %arg1[%c0_1, %c0_2] : memref<2x4xf32, #tpu.memory_space<vmem>>, vector<1x4xf32>
    %c1 = arith.constant 1 : index
    %c0_3 = arith.constant 0 : index
    %2 = vector.load %arg1[%c1, %c0_3] : memref<2x4xf32, #tpu.memory_space<vmem>>, vector<1x4xf32>
    %3 = arith.subf %1, %0 : vector<1x4xf32>
    %cst = arith.constant 0.899999976 : f32
    %4 = vector.broadcast %cst : f32 to vector<1x4xf32>
    %5 = arith.mulf %4, %1 : vector<1x4xf32>
    %cst_4 = arith.constant 1.000000e-01 : f32
    %6 = vector.broadcast %cst_4 : f32 to vector<1x4xf32>
    %7 = arith.mulf %6, %0 : vector<1x4xf32>
    %8 = arith.addf %5, %7 : vector<1x4xf32>
    %cst_5 = arith.constant 0.899999976 : f32
    %9 = vector.broadcast %cst_5 : f32 to vector<1x4xf32>
    %10 = arith.mulf %9, %2 : vector<1x4xf32>
    %cst_6 = arith.constant 1.000000e-01 : f32
    %11 = vector.broadcast %cst_6 : f32 to vector<1x4xf32>
    %12 = arith.mulf %11, %3 : vector<1x4xf32>
    %13 = arith.addf %10, %12 : vector<1x4xf32>
    %c0_7 = arith.constant 0 : index
    %c0_8 = arith.constant 0 : index
    %14 = vector.load %arg4[%c0_7, %c0_8] : memref<2x4xf32, #tpu.memory_space<vmem>>, vector<1x4xf32>
    tpu.vector_store %arg4[%c0_7, %c0_8], %8 {strides = array<i32>} : memref<2x4xf32, #tpu.memory_space<vmem>>, vector<1x4xf32>,
    %c1_9 = arith.constant 1 : index
    %c0_10 = arith.constant 0 : index
    %15 = vector.load %arg4[%c1_9, %c0_10] : memref<2x4xf32, #tpu.memory_space<vmem>>, vector<1x4xf32>
    tpu.vector_store %arg4[%c1_9, %c0_10], %13 {strides = array<i32>} : memref<2x4xf32, #tpu.memory_space<vmem>>, vector<1x4xf32>,
    %c0_11 = arith.constant 0 : index
    %c0_12 = arith.constant 0 : index
    %16 = vector.load %arg2[%c0_11, %c0_12] : memref<72x128xf32, #tpu.memory_space<vmem>>, vector<32x4xf32>
    %c0_13 = arith.constant 0 : index
    %c4 = arith.constant 4 : index
    %17 = vector.load %arg2[%c0_13, %c4] : memref<72x128xf32, #tpu.memory_space<vmem>>, vector<32x4xf32>
    %c0_14 = arith.constant 0 : index
    %c8 = arith.constant 8 : index
    %18 = vector.load %arg2[%c0_14, %c8] : memref<72x128xf32, #tpu.memory_space<vmem>>, vector<32x1xf32>
    %c0_15 = arith.constant 0 : index
    %c9 = arith.constant 9 : index
    %19 = vector.load %arg2[%c0_15, %c9] : memref<72x128xf32, #tpu.memory_space<vmem>>, vector<32x1xf32>
    %c0_16 = arith.constant 0 : index
    %c10 = arith.constant 10 : index
    %20 = vector.load %arg2[%c0_16, %c10] : memref<72x128xf32, #tpu.memory_space<vmem>>, vector<32x1xf32>
    %c32 = arith.constant 32 : index
    %c0_17 = arith.constant 0 : index
    %21 = vector.load %arg2[%c32, %c0_17] : memref<72x128xf32, #tpu.memory_space<vmem>>, vector<32x128xf32>
    %c64 = arith.constant 64 : index
    %c0_18 = arith.constant 0 : index
    %22 = vector.load %arg2[%c64, %c0_18] : memref<72x128xf32, #tpu.memory_space<vmem>>, vector<1x128xf32>
    %c65 = arith.constant 65 : index
    %c0_19 = arith.constant 0 : index
    %23 = vector.load %arg2[%c65, %c0_19] : memref<72x128xf32, #tpu.memory_space<vmem>>, vector<1x128xf32>
    %24 = vector.broadcast %8 : vector<1x4xf32> to vector<32x4xf32>
    %25 = arith.mulf %24, %16 : vector<32x4xf32>
    %26 = vector.broadcast %13 : vector<1x4xf32> to vector<32x4xf32>
    %27 = arith.mulf %26, %17 : vector<32x4xf32>
    %28 = arith.addf %25, %27 : vector<32x4xf32>
    %cst_20 = arith.constant dense<0.000000e+00> : vector<32xf32>
    %29 = vector.multi_reduction <add>, %28, %cst_20 [1] : vector<32x4xf32> to vector<32xf32>
    %30 = vector.shape_cast %29 : vector<32xf32> to vector<32x1xf32>
    %31 = arith.addf %30, %18 : vector<32x1xf32>
    %cst_21 = arith.constant dense<0.000000e+00> : vector<1xf32>
    %32 = vector.multi_reduction <add>, %31, %cst_21 [0] : vector<32x1xf32> to vector<1xf32>
    %33 = vector.shape_cast %32 : vector<1xf32> to vector<1x1xf32>
    %cst_22 = arith.constant 3.200000e+01 : f32
    %34 = vector.broadcast %cst_22 : f32 to vector<1x1xf32>
    %35 = arith.divf %33, %34 : vector<1x1xf32>
    %36 = vector.broadcast %35 : vector<1x1xf32> to vector<32x1xf32>
    %37 = arith.subf %31, %36 : vector<32x1xf32>
    %38 = arith.mulf %37, %37 : vector<32x1xf32>
    %cst_23 = arith.constant dense<0.000000e+00> : vector<1xf32>
    %39 = vector.multi_reduction <add>, %38, %cst_23 [0] : vector<32x1xf32> to vector<1xf32>
    %40 = vector.shape_cast %39 : vector<1xf32> to vector<1x1xf32>
    %cst_24 = arith.constant 3.200000e+01 : f32
    %41 = vector.broadcast %cst_24 : f32 to vector<1x1xf32>
    %42 = arith.divf %40, %41 : vector<1x1xf32>
    %cst_25 = arith.constant 9.99999974E-6 : f32
    %43 = vector.broadcast %cst_25 : f32 to vector<1x1xf32>
    %44 = arith.addf %42, %43 : vector<1x1xf32>
    %45 = math.rsqrt %44 : vector<1x1xf32>
    %46 = vector.broadcast %45 : vector<1x1xf32> to vector<32x1xf32>
    %47 = arith.mulf %37, %46 : vector<32x1xf32>
    %48 = arith.mulf %47, %19 : vector<32x1xf32>
    %49 = arith.addf %48, %20 : vector<32x1xf32>
    %cst_26 = arith.constant 0.000000e+00 : f32
    %50 = vector.broadcast %cst_26 : f32 to vector<32x1xf32>
    %51 = arith.maximumf %49, %50 : vector<32x1xf32>
    %52 = vector.broadcast %51 : vector<32x1xf32> to vector<32x128xf32>
    %53 = arith.mulf %52, %21 : vector<32x128xf32>
    %cst_27 = arith.constant dense<0.000000e+00> : vector<128xf32>
    %54 = vector.multi_reduction <add>, %53, %cst_27 [0] : vector<32x128xf32> to vector<128xf32>
    %55 = vector.shape_cast %54 : vector<128xf32> to vector<1x128xf32>
    %56 = arith.addf %55, %22 : vector<1x128xf32>
    %57 = arith.mulf %56, %23 : vector<1x128xf32>
    %cst_28 = arith.constant dense<0xFF800000> : vector<1xf32>
    %58 = vector.multi_reduction <maximumf>, %57, %cst_28 [1] : vector<1x128xf32> to vector<1xf32>
    %59 = vector.shape_cast %58 : vector<1xf32> to vector<1x1xf32>
    %60 = vector.broadcast %59 : vector<1x1xf32> to vector<1x128xf32>
    %61 = arith.subf %57, %60 : vector<1x128xf32>
    %62 = math.exp %61 : vector<1x128xf32>
    %cst_29 = arith.constant dense<0.000000e+00> : vector<1xf32>
    %63 = vector.multi_reduction <add>, %62, %cst_29 [1] : vector<1x128xf32> to vector<1xf32>
    %64 = vector.shape_cast %63 : vector<1xf32> to vector<1x1xf32>
    %65 = vector.broadcast %64 : vector<1x1xf32> to vector<1x128xf32>
    %66 = arith.divf %62, %65 : vector<1x128xf32>
    %c0_30 = arith.constant 0 : index
    %c0_31 = arith.constant 0 : index
    %67 = vector.load %arg3[%c0_30, %c0_31] : memref<1x128xf32, #tpu.memory_space<vmem>>, vector<1x128xf32>
    tpu.vector_store %arg3[%c0_30, %c0_31], %66 {strides = array<i32>} : memref<1x128xf32, #tpu.memory_space<vmem>>, vector<1x128xf32>,
    return
  }
}

</mosaic_0001>

<llo_original>
// kernel: learning_curve_importance.1
$region0: #{learning_curve_importance.1}
  #allocation0 [shape = 'u32[]', space=smem, size = 0x4, offset = 0x4, fixed_abs, tag = 'smem constant byte address 0x4 - core index']
  #allocation1 [shape = 'u32[144,128]{1,0:T(1,128)}', space=vmem, size = 0x12000, scoped, tag = 'internal scratch']
  %s0 = inlined_call_operand.vmem [shape: f32[1,4], index: 0, kind: input, shape index: {}]
  %s1 = inlined_call_operand.vmem [shape: f32[2,4], index: 1, kind: input, shape index: {}, may-alias: {1,4}]
  %s2 = inlined_call_operand.hbm [shape: f32[72,128], index: 2, kind: input, shape index: {}]
  %s3 = inlined_call_operand.vmem [shape: f32[1,128], index: 3, kind: output, shape index: {0}]
  %s4 = inlined_call_operand.vmem [shape: f32[2,4], index: 4, kind: output, shape index: {1}, may-alias: {1,4}]
  %5 = xla_tuple %s3, %s4
  %s6 = sld [smem:[#allocation0]]
  $region34: #{learning_curve_importance.1} parent=0
    _
  %s8 = ssub.s32 1, %s6
  %s9 = scalar_select 0, %s8, %s6
  $region1: #{learning_curve_importance.1} parent=0
    #allocation2 [shape = 'u8[36864]{0}', space=vmem, size = 0x9000, scoped, tag = 'input window, operand 2, single buffered']
    #allocation3 [shape = 's32[1]{0}', space=sflag, size = 0x4, scoped, tag = 'scoped memory for learning_curve_importance.1']
    %10 = vsyncpa [#allocation3], 0
    // Predicated region
    $region2: #{learning_curve_importance.1} parent=1 // pred_check
      _
    $region3: #{learning_curve_importance.1} parent=1 // pred_check_branch
      %12 = sbr.rel (0) target = $region5
    $region4: #{learning_curve_importance.1} parent=1 // pred_region
      _
    $region5: #{learning_curve_importance.1} parent=1 // pred_fallthru
      _
    // Predicated region
    $region6: #{learning_curve_importance.1} parent=1 // pred_check
      _
    $region7: #{learning_curve_importance.1} parent=1 // pred_check_branch
      %14 = sbr.rel (0) target = $region9
    $region8: #{learning_curve_importance.1} parent=1 // pred_region
      _
    $region9: #{learning_curve_importance.1} parent=1 // pred_fallthru
      _
    // Predicated region
    $region10: #{learning_curve_importance.1} parent=1 // pred_check
      _
    $region11: #{learning_curve_importance.1} parent=1 // pred_check_branch
      %16 = sbr.rel (0) target = $region13
    $region12: #{learning_curve_importance.1} parent=1 // pred_region
      %s18 = ssub.s32 1152, 1152
      %19 = vsyncadd [#allocation3], %s18
      %s20 = sshll.u32 [#allocation2], 4
      %s21 = int_to_ptr.vmem [resolvable:$true] %s20
      %26 = dma.hbm_to_vmem [thread:$0]  %s2, 1152, %s21, [#allocation3], 128, 128, 8
    $region13: #{learning_curve_importance.1} parent=1 // pred_fallthru
      _
    // Predicated region
    $region14: #{learning_curve_importance.1} parent=1 // pred_check
      _
    $region15: #{learning_curve_importance.1} parent=1 // pred_check_branch
      %28 = sbr.rel (0) target = $region17
    $region16: #{learning_curve_importance.1} parent=1 // pred_region
      %29 = dma.done [#allocation3], 1152
    $region17: #{learning_curve_importance.1} parent=1 // pred_fallthru
      _
    %v30 = vld [vmem:[%s0] sm:$0x1]
    %v31 = vld [vmem:[%s1] sm:$0x1]
    %v32 = vld [vmem:[%s1 + $0x1] sm:$0x1]
    %v33 = vsub.f32 %v31, %v30
    %v34 = vmul.f32 %v31, 0.9
    %v35 = vmul.f32 %v30, 0.1
    %v36 = vadd.f32 %v34, %v35
    %v37 = vmul.f32 %v32, 0.9
    %v38 = vmul.f32 %v33, 0.1
    %v39 = vadd.f32 %v37, %v38
    %vm40 = vcmask 24576
    %41 = vst.msk [vmem:[%s4] sm:$0x1] %vm40, %v36
    %42 = vst.msk [vmem:[%s4 + $0x1] sm:$0x1] %vm40, %v39
    %v43 = vld [vmem:[#allocation2] sm:$0xff]
    %v44 = vld [vmem:[#allocation2 + $0x8] sm:$0xff]
    %v45 = vld [vmem:[#allocation2 + $0x10] sm:$0xff]
    %v46 = vld [vmem:[#allocation2 + $0x18] sm:$0xff]
    %v47 = vld [vmem:[#allocation2 + $0x20] sm:$0xff]
    %v48 = vld [vmem:[#allocation2 + $0x28] sm:$0xff]
    %v49 = vld [vmem:[#allocation2 + $0x30] sm:$0xff]
    %v50 = vld [vmem:[#allocation2 + $0x38] sm:$0xff]
    %v51 = vld [vmem:[#allocation2 + $0x40] sm:$0x1]
    %v52 = vld [vmem:[#allocation2 + $0x41] sm:$0x1]
    %v53 = vlaneseq
    %v54 = vshrl.u32 %v53, 7
    %v55 = vsub.s32 0, %v54
    %v56 = vrot.slane %v36, %v55
    %v57 = vmul.f32 %v56, %v43
    %v58 = vmul.f32 %v56, %v44
    %v59 = vmul.f32 %v56, %v45
    %v60 = vmul.f32 %v56, %v46
    %v61 = vlaneseq
    %v62 = vshrl.u32 %v61, 7
    %v63 = vsub.s32 0, %v62
    %v64 = vrot.slane %v39, %v63
    %69 = vrot.lane.b32.xlu0 %v43, 124
    %v70 = vpop.permute.xlu0 %69
    %71 = vrot.lane.b32.xlu0 %v44, 124
    %v72 = vpop.permute.xlu0 %71
    %73 = vrot.lane.b32.xlu0 %v45, 124
    %v74 = vpop.permute.xlu0 %73
    %75 = vrot.lane.b32.xlu0 %v46, 124
    %v76 = vpop.permute.xlu0 %75
    %v81 = vmul.f32 %v64, %v70
    %v82 = vmul.f32 %v64, %v72
    %v83 = vmul.f32 %v64, %v74
    %v84 = vmul.f32 %v64, %v76
    %v85 = vadd.f32 %v57, %v81
    %v86 = vadd.f32 %v58, %v82
    %v87 = vadd.f32 %v59, %v83
    %v88 = vadd.f32 %v60, %v84
    %vm89 = vcmask 31744
    %v90 = vsel %vm89, %v85, 0.0
    %91 = vadd.xlane.f32.xlu0 %v90
    %v92 = vpop.xlane.xlu0 %91
    %v93 = vsel %vm89, %v86, 0.0
    %94 = vadd.xlane.f32.xlu0 %v93
    %v95 = vpop.xlane.xlu0 %94
    %v96 = vsel %vm89, %v87, 0.0
    %97 = vadd.xlane.f32.xlu0 %v96
    %v98 = vpop.xlane.xlu0 %97
    %v99 = vsel %vm89, %v88, 0.0
    %100 = vadd.xlane.f32.xlu0 %v99
    %v101 = vpop.xlane.xlu0 %100
    %v102 = vadd.f32 %v92, %v43
    %v103 = vadd.f32 %v95, %v44
    %v104 = vadd.f32 %v98, %v45
    %v105 = vadd.f32 %v101, %v46
    %vm106 = vcmask 72768
    %v107 = vsel %vm106, %v102, 0.0
    %v108 = vsel %vm106, %v103, 0.0
    %v109 = vadd.f32 %v107, %v108
    %v110 = vsel %vm106, %v104, 0.0
    %v111 = vadd.f32 %v109, %v110
    %v112 = vsel %vm106, %v105, 0.0
    %v113 = vadd.f32 %v111, %v112
    %v114 = vrot.slane %v113, 4
    %v115 = vadd.f32 %v113, %v114
    %v116 = vrot.slane %v115, 2
    %v117 = vadd.f32 %v115, %v116
    %v118 = vrot.slane %v117, 1
    %v119 = vadd.f32 %v117, %v118
    %v120 = vrcp.pop 32.0
    %v121 = vmul.f32 %v119, %v120
    %v122 = vsub.f32 %v102, %v121
    %v123 = vsub.f32 %v103, %v121
    %v124 = vsub.f32 %v104, %v121
    %v125 = vsub.f32 %v105, %v121
    %v126 = vmul.f32 %v122, %v122
    %v127 = vmul.f32 %v123, %v123
    %v128 = vmul.f32 %v124, %v124
    %v129 = vmul.f32 %v125, %v125
    %v130 = vsel %vm106, %v126, 0.0
    %v131 = vsel %vm106, %v127, 0.0
    %v132 = vadd.f32 %v130, %v131
    %v133 = vsel %vm106, %v128, 0.0
    %v134 = vadd.f32 %v132, %v133
    %v135 = vsel %vm106, %v129, 0.0
    %v136 = vadd.f32 %v134, %v135
    %v137 = vrot.slane %v136, 4
    %v138 = vadd.f32 %v136, %v137
    %v139 = vrot.slane %v138, 2
    %v140 = vadd.f32 %v138, %v139
    %v141 = vrot.slane %v140, 1
    %v142 = vadd.f32 %v140, %v141
    %v143 = vmul.f32 %v142, %v120
    %v144 = vadd.f32 %v143, 1e-05
    %v145 = vrsqrt.pop %v144
    %v146 = vmul.f32 %v122, %v145
    %v147 = vmul.f32 %v123, %v145
    %v148 = vmul.f32 %v124, %v145
    %v149 = vmul.f32 %v125, %v145
    %150 = vrot.lane.b32.xlu0 %v43, 127
    %v151 = vpop.permute.xlu0 %150
    %152 = vrot.lane.b32.xlu0 %v44, 127
    %v153 = vpop.permute.xlu0 %152
    %154 = vrot.lane.b32.xlu0 %v45, 127
    %v155 = vpop.permute.xlu0 %154
    %156 = vrot.lane.b32.xlu0 %v46, 127
    %v157 = vpop.permute.xlu0 %156
    %v162 = vmul.f32 %v146, %v151
    %v163 = vmul.f32 %v147, %v153
    %v164 = vmul.f32 %v148, %v155
    %v165 = vmul.f32 %v149, %v157
    %166 = vrot.lane.b32.xlu0 %v43, 126
    %v167 = vpop.permute.xlu0 %166
    %168 = vrot.lane.b32.xlu0 %v44, 126
    %v169 = vpop.permute.xlu0 %168
    %170 = vrot.lane.b32.xlu0 %v45, 126
    %v171 = vpop.permute.xlu0 %170
    %172 = vrot.lane.b32.xlu0 %v46, 126
    %v173 = vpop.permute.xlu0 %172
    %v178 = vadd.f32 %v162, %v167
    %v179 = vadd.f32 %v163, %v169
    %v180 = vadd.f32 %v164, %v171
    %v181 = vadd.f32 %v165, %v173
    %v182 = vmax.f32 %v178, 0.0
    %v183 = vmax.f32 %v179, 0.0
    %v184 = vmax.f32 %v180, 0.0
    %v185 = vmax.f32 %v181, 0.0
    %187 = vset.pattern.permute.xlu0 8
    %188 = vperm.xlu0 %187, %v182
    %v189 = vpop.permute.xlu0 %188
    %192 = vset.pattern.permute.xlu0 8
    %193 = vperm.xlu0 %192, %v183
    %v194 = vpop.permute.xlu0 %193
    %197 = vset.pattern.permute.xlu0 8
    %198 = vperm.xlu0 %197, %v184
    %v199 = vpop.permute.xlu0 %198
    %202 = vset.pattern.permute.xlu0 8
    %203 = vperm.xlu0 %202, %v185
    %v204 = vpop.permute.xlu0 %203
    %v206 = vmul.f32 %v189, %v47
    %v207 = vmul.f32 %v194, %v48
    %v208 = vmul.f32 %v199, %v49
    %v209 = vmul.f32 %v204, %v50
    %v210 = vadd.f32 %v206, %v207
    %v211 = vadd.f32 %v210, %v208
    %v212 = vadd.f32 %v211, %v209
    %v213 = vrot.slane %v212, 4
    %v214 = vadd.f32 %v212, %v213
    %v215 = vrot.slane %v214, 2
    %v216 = vadd.f32 %v214, %v215
    %v217 = vrot.slane %v216, 1
    %v218 = vadd.f32 %v216, %v217
    %v219 = vadd.f32 %v218, %v51
    %v220 = vmul.f32 %v219, %v52
    %vm221 = vcmask 1040384
    %v222 = vsel %vm221, %v220, -inf
    %223 = vmax.xlane.f32.xlu0 %v222
    %v224 = vpop.xlane.xlu0 %223
    %v225 = vsub.f32 %v220, %v224
    %v226 = vmul.f32 %v225, 1.442695
    %v227 = vpow.pop %v226
    %v228 = vsel %vm221, %v227, 0.0
    %229 = vadd.xlane.f32.xlu0 %v228
    %v230 = vpop.xlane.xlu0 %229
    %v231 = vrcp.pop %v230
    %v232 = vmul.f32 %v227, %v231
    %233 = vst [vmem:[%s3] sm:$0x1] %v232
    // Predicated region
    $region18: #{learning_curve_importance.1} parent=1 // pred_check
      _
    $region19: #{learning_curve_importance.1} parent=1 // pred_check_branch
      %235 = sbr.rel (0) target = $region21
    $region20: #{learning_curve_importance.1} parent=1 // pred_region
      _
    $region21: #{learning_curve_importance.1} parent=1 // pred_fallthru
      _
    // Predicated region
    $region22: #{learning_curve_importance.1} parent=1 // pred_check
      _
    $region23: #{learning_curve_importance.1} parent=1 // pred_check_branch
      %237 = sbr.rel (0) target = $region25
    $region24: #{learning_curve_importance.1} parent=1 // pred_region
      _
    $region25: #{learning_curve_importance.1} parent=1 // pred_fallthru
      _
    // Predicated region
    $region26: #{learning_curve_importance.1} parent=1 // pred_check
      _
    $region27: #{learning_curve_importance.1} parent=1 // pred_check_branch
      %239 = sbr.rel (0) target = $region29
    $region28: #{learning_curve_importance.1} parent=1 // pred_region
      _
    $region29: #{learning_curve_importance.1} parent=1 // pred_fallthru
      _
    // Predicated region
    $region30: #{learning_curve_importance.1} parent=1 // pred_check
      _
    $region31: #{learning_curve_importance.1} parent=1 // pred_check_branch
      %241 = sbr.rel (0) target = $region33
    $region32: #{learning_curve_importance.1} parent=1 // pred_region
      _
    $region33: #{learning_curve_importance.1} parent=1 // pred_fallthru
      _
    %242 = vsyncpa [#allocation3], 1

</llo_original>
